<compile_context>
chip_gen: v6e
topology: v6e:2x2x1
jax: 0.10.0
libtpu: 0.0.40
codegen_flags: <defaults>
</compile_context>

<pallas_src>
import jax
import jax.numpy as jnp
from jax.experimental import pallas as pl
from jax.experimental.pallas import tpu as pltpu

_LANE = 128
_SUBLANE_PACK = 16      # bf16-safe sublane granularity (also valid for f32)
_MAX_TILE_B = 2048      # per-tile HBM blocks: 2048x32 in + 2048x2 out  (tiny)


def _round_up(x, m):
    return ((x + m - 1) // m) * m


def _fused_mlp_kernel(x_ref, w1_ref, b1_ref, w2_ref, b2_ref, w3_ref, b3_ref,
                      o_ref):
    """o = relu(relu(x@W1+b1)@W2+b2) @ W3[:, :d_out] + b3 — all on-chip."""
    d_out = o_ref.shape[1]
    x = x_ref[...].astype(jnp.bfloat16)                       # [TB, D_in]
    h = jnp.dot(x, w1_ref[...], preferred_element_type=jnp.float32)
    h = jnp.maximum(h + b1_ref[...], 0.0)                     # [TB, 128] f32
    h = jnp.dot(h.astype(jnp.bfloat16), w2_ref[...],
                preferred_element_type=jnp.float32)
    h = jnp.maximum(h + b2_ref[...], 0.0)                     # [TB, 128] f32
    y = jnp.dot(h.astype(jnp.bfloat16), w3_ref[...],
                preferred_element_type=jnp.float32)           # [TB, 128] f32
    # Slice the lane-padded MXU result down to the real outputs before the
    # HBM store (only d_out columns ever leave VMEM).
    o_ref[...] = (y[:, :d_out] + b3_ref[...]).astype(o_ref.dtype)


def _choose_tile_b(batch):
    """Batch tile: one step for small B, >=2 parallel steps for large B."""
    if batch <= 1024:
        return _round_up(batch, _SUBLANE_PACK)
    # Guarantee >= 2 grid steps (v7x megacore) while capping the tile size.
    return min(_MAX_TILE_B, _round_up((batch + 1) // 2, _SUBLANE_PACK))


def fused_mlp_forward(x, w1, b1, w2, b2, w3, b3, d_out):
    """x: [B, D_in] (f32 or bf16) -> [B, d_out] f32."""
    batch, d_in = x.shape
    h1p = w1.shape[1]
    h2p = w2.shape[1]
    dout_pad = w3.shape[1]

    tile_b = _choose_tile_b(batch)
    grid = (pl.cdiv(batch, tile_b),)        # partial last block is masked

    return pl.pallas_call(
        _fused_mlp_kernel,
        out_shape=jax.ShapeDtypeStruct((batch, d_out), jnp.float32),
        grid=grid,
        in_specs=[
            pl.BlockSpec((tile_b, d_in), lambda i: (i, 0)),    # activations
            pl.BlockSpec((d_in, h1p), lambda i: (0, 0)),       # W1 (resident, bf16)
            pl.BlockSpec((1, h1p), lambda i: (0, 0)),          # b1 (f32)
            pl.BlockSpec((h1p, h2p), lambda i: (0, 0)),        # W2 (bf16)
            pl.BlockSpec((1, h2p), lambda i: (0, 0)),          # b2 (f32)
            pl.BlockSpec((h2p, dout_pad), lambda i: (0, 0)),   # W3 lane-padded (bf16)
            pl.BlockSpec((1, d_out), lambda i: (0, 0)),        # b3 (f32, unpadded)
        ],
        out_specs=pl.BlockSpec((tile_b, d_out), lambda i: (i, 0)),
        compiler_params=pltpu.CompilerParams(
            dimension_semantics=("parallel",),
            vmem_limit_bytes=32 * 1024 * 1024,
        ),
    )(x, w1, b1, w2, b2, w3, b3)


class MultiLayerPolicy:
    """MLP policy: D_in -> 64 -> 64 -> 2 (steer, accel), fused Pallas forward."""
    # TODO(synk): the original nn.Module is an empty skeleton; layer sizes here
    # follow the canonical homework MLP policy head.

    def __init__(self, d_in=32, hidden=(64, 64), d_out=2, key=None):
        if key is None:
            key = jax.random.PRNGKey(42)
        dims = (d_in,) + tuple(hidden) + (d_out,)
        self.d_out = d_out
        self.params = []                 # raw f32 params (reference / export)
        for i in range(len(dims) - 1):
            key, kw, kb = jax.random.split(key, 3)
            bound = 1.0 / float(dims[i]) ** 0.5   # PyTorch nn.Linear init
            w = jax.random.uniform(kw, (dims[i], dims[i + 1]),
                                   minval=-bound, maxval=bound,
                                   dtype=jnp.float32)
            b = jax.random.uniform(kb, (dims[i + 1],),
                                   minval=-bound, maxval=bound,
                                   dtype=jnp.float32)
            self.params.append((w, b))

        # Kernel-ready params (built once): lane-dense hidden widths (exact,
        # zero padding), bf16 weights, f32 2-D biases, W3 output lanes padded
        # to 128 for the MXU; b3 stays at the true d_out width.
        (w1, b1), (w2, b2), (w3, b3) = self.params
        h1, h2 = hidden
        h1p = _round_up(h1, _LANE)
        h2p = _round_up(h2, _LANE)
        dop = _round_up(d_out, _LANE)
        w1p = jnp.zeros((d_in, h1p), jnp.float32).at[:, :h1].set(w1)
        b1p = jnp.zeros((1, h1p), jnp.float32).at[0, :h1].set(b1)
        w2p = jnp.zeros((h1p, h2p), jnp.float32).at[:h1, :h2].set(w2)
        b2p = jnp.zeros((1, h2p), jnp.float32).at[0, :h2].set(b2)
        w3p = jnp.zeros((h2p, dop), jnp.float32).at[:h2, :d_out].set(w3)
        self._kernel_params = (
            w1p.astype(jnp.bfloat16), b1p,
            w2p.astype(jnp.bfloat16), b2p,
            w3p.astype(jnp.bfloat16), b3.reshape(1, d_out),
        )

    def __call__(self, features):
        w1, b1, w2, b2, w3, b3 = self._kernel_params
        return fused_mlp_forward(features, w1, b1, w2, b2, w3, b3, self.d_out)


def _reference_forward(policy, features):
    """Pure-JAX reference emulating the kernel's numerics:
    bf16-rounded weights/activations, f32 accumulation, f32 bias adds."""
    bf16 = jnp.bfloat16
    x = features.astype(bf16).astype(jnp.float32)
    n = len(policy.params)
    for i, (w, b) in enumerate(policy.params):
        w32 = w.astype(bf16).astype(jnp.float32)
        x = jnp.dot(x, w32, precision=jax.lax.Precision.HIGHEST) + b
        if i < n - 1:
            x = jnp.maximum(x, 0.0).astype(bf16).astype(jnp.float32)
    return x


if __name__ == "__main__":
    key = jax.random.PRNGKey(0)
    D_IN = 32
    policy = MultiLayerPolicy(d_in=D_IN, hidden=(64, 64), d_out=2)
    k1, k2, k3 = jax.random.split(key, 3)

    # (1) Tiny f32 batch: single grid step, partial (masked) block.
    feats_small = jax.random.normal(k1, (2, D_IN), dtype=jnp.float32)
    out_small = jax.block_until_ready(policy(feats_small))
    ref_small = _reference_forward(policy, feats_small)
    assert out_small.shape == (2, 2)
    assert jnp.allclose(out_small, ref_small, atol=1e-2, rtol=1e-2)

    # (2) bf16 features accepted directly (halves the input HBM read).
    feats_bf16 = jax.random.normal(k2, (10, D_IN),
                                   dtype=jnp.float32).astype(jnp.bfloat16)
    out_bf16 = jax.block_until_ready(policy(feats_bf16))
    ref_bf16 = _reference_forward(policy, feats_bf16)
    assert out_bf16.shape == (10, 2)
    assert jnp.allclose(out_bf16, ref_bf16, atol=1e-2, rtol=1e-2)

    # (3) Batch > 1024: >= 2 parallel grid steps + partial last block.
    feats_big = jax.random.normal(k3, (1300, D_IN), dtype=jnp.float32)
    out_big = jax.block_until_ready(policy(feats_big))
    ref_big = _reference_forward(policy, feats_big)
    assert out_big.shape == (1300, 2)
    assert jnp.allclose(out_big, ref_big, atol=1e-2, rtol=1e-2)

    print("KERNEL_OK")
</pallas_src>

<mosaic_0001>
module attributes {stable_mosaic.version = 11 : i64} {
  func.func @_fused_mlp_kernel(%arg0: i32, %arg1: memref<16x32xf32, #tpu.memory_space<vmem>>, %arg2: memref<32x128xbf16, #tpu.memory_space<vmem>>, %arg3: memref<1x128xf32, #tpu.memory_space<vmem>>, %arg4: memref<128x128xbf16, #tpu.memory_space<vmem>>, %arg5: memref<1x128xf32, #tpu.memory_space<vmem>>, %arg6: memref<128x128xbf16, #tpu.memory_space<vmem>>, %arg7: memref<1x2xf32, #tpu.memory_space<vmem>>, %arg8: memref<16x2xf32, #tpu.memory_space<vmem>>) attributes {dimension_semantics = [#tpu.dimension_semantics<parallel>], iteration_bounds = array<i64: 1>, scalar_prefetch = 0 : i64, scratch_operands = 0 : i64, tpu.core_type = #tpu.core_type<tc>, window_params = [{transform_indices = @transform_0, window_bounds = array<i64: 16, 32>}, {pipeline_mode = #tpu.pipeline_mode<synchronous>, transform_indices = @transform_1, window_bounds = array<i64: 32, 128>}, {pipeline_mode = #tpu.pipeline_mode<synchronous>, transform_indices = @transform_2, window_bounds = array<i64: 1, 128>}, {pipeline_mode = #tpu.pipeline_mode<synchronous>, transform_indices = @transform_3, window_bounds = array<i64: 128, 128>}, {pipeline_mode = #tpu.pipeline_mode<synchronous>, transform_indices = @transform_4, window_bounds = array<i64: 1, 128>}, {pipeline_mode = #tpu.pipeline_mode<synchronous>, transform_indices = @transform_5, window_bounds = array<i64: 128, 128>}, {pipeline_mode = #tpu.pipeline_mode<synchronous>, transform_indices = @transform_6, window_bounds = array<i64: 1, 2>}, {transform_indices = @transform_7, window_bounds = array<i64: 16, 2>}]} {
    %c0 = arith.constant 0 : index
    %c0_0 = arith.constant 0 : index
    %0 = vector.load %arg1[%c0, %c0_0] : memref<16x32xf32, #tpu.memory_space<vmem>>, vector<16x32xf32>
    %1 = arith.truncf %0 : vector<16x32xf32> to vector<16x32xbf16>
    %c0_1 = arith.constant 0 : index
    %c0_2 = arith.constant 0 : index
    %2 = vector.load %arg2[%c0_1, %c0_2] : memref<32x128xbf16, #tpu.memory_space<vmem>>, vector<32x128xbf16>
    %cst = arith.constant dense<0.000000e+00> : vector<16x128xf32>
    %3 = tpu.matmul %1, %2, %cst {dimension_numbers = #tpu.dot_dimension_numbers<[1], [0], [0], [1], [0, 0, 1, 1], [], []>} : vector<16x32xbf16>, vector<32x128xbf16>, vector<16x128xf32> -> vector<16x128xf32>
    %c0_3 = arith.constant 0 : index
    %c0_4 = arith.constant 0 : index
    %4 = vector.load %arg3[%c0_3, %c0_4] : memref<1x128xf32, #tpu.memory_space<vmem>>, vector<1x128xf32>
    %5 = vector.broadcast %4 : vector<1x128xf32> to vector<16x128xf32>
    %6 = arith.addf %3, %5 : vector<16x128xf32>
    %cst_5 = arith.constant 0.000000e+00 : f32
    %7 = vector.broadcast %cst_5 : f32 to vector<16x128xf32>
    %8 = arith.maximumf %6, %7 : vector<16x128xf32>
    %9 = arith.truncf %8 : vector<16x128xf32> to vector<16x128xbf16>
    %c0_6 = arith.constant 0 : index
    %c0_7 = arith.constant 0 : index
    %10 = vector.load %arg4[%c0_6, %c0_7] : memref<128x128xbf16, #tpu.memory_space<vmem>>, vector<128x128xbf16>
    %cst_8 = arith.constant dense<0.000000e+00> : vector<16x128xf32>
    %11 = tpu.matmul %9, %10, %cst_8 {dimension_numbers = #tpu.dot_dimension_numbers<[1], [0], [0], [1], [0, 0, 1, 1], [], []>} : vector<16x128xbf16>, vector<128x128xbf16>, vector<16x128xf32> -> vector<16x128xf32>
    %c0_9 = arith.constant 0 : index
    %c0_10 = arith.constant 0 : index
    %12 = vector.load %arg5[%c0_9, %c0_10] : memref<1x128xf32, #tpu.memory_space<vmem>>, vector<1x128xf32>
    %13 = vector.broadcast %12 : vector<1x128xf32> to vector<16x128xf32>
    %14 = arith.addf %11, %13 : vector<16x128xf32>
    %cst_11 = arith.constant 0.000000e+00 : f32
    %15 = vector.broadcast %cst_11 : f32 to vector<16x128xf32>
    %16 = arith.maximumf %14, %15 : vector<16x128xf32>
    %17 = arith.truncf %16 : vector<16x128xf32> to vector<16x128xbf16>
    %c0_12 = arith.constant 0 : index
    %c0_13 = arith.constant 0 : index
    %18 = vector.load %arg6[%c0_12, %c0_13] : memref<128x128xbf16, #tpu.memory_space<vmem>>, vector<128x128xbf16>
    %cst_14 = arith.constant dense<0.000000e+00> : vector<16x128xf32>
    %19 = tpu.matmul %17, %18, %cst_14 {dimension_numbers = #tpu.dot_dimension_numbers<[1], [0], [0], [1], [0, 0, 1, 1], [], []>} : vector<16x128xbf16>, vector<128x128xbf16>, vector<16x128xf32> -> vector<16x128xf32>
    %20 = vector.extract_strided_slice %19 {offsets = [0, 0], sizes = [16, 2], strides = [1, 1]} : vector<16x128xf32> to vector<16x2xf32>
    %c0_15 = arith.constant 0 : index
    %c0_16 = arith.constant 0 : index
    %21 = vector.load %arg7[%c0_15, %c0_16] : memref<1x2xf32, #tpu.memory_space<vmem>>, vector<1x2xf32>
    %22 = vector.broadcast %21 : vector<1x2xf32> to vector<16x2xf32>
    %23 = arith.addf %20, %22 : vector<16x2xf32>
    %c0_17 = arith.constant 0 : index
    %c0_18 = arith.constant 0 : index
    %24 = vector.load %arg8[%c0_17, %c0_18] : memref<16x2xf32, #tpu.memory_space<vmem>>, vector<16x2xf32>
    tpu.vector_store %arg8[%c0_17, %c0_18], %23 {strides = array<i32>} : memref<16x2xf32, #tpu.memory_space<vmem>>, vector<16x2xf32>,
    return
  }
  func.func @transform_0(%arg0: i32) -> (i32, i32) {
    %c0_i32 = arith.constant 0 : i32
    %c0_i32_0 = arith.constant 0 : i32
    return %arg0, %c0_i32 : i32, i32
  }
  func.func @transform_1(%arg0: i32) -> (i32, i32) {
    %c0_i32 = arith.constant 0 : i32
    %c0_i32_0 = arith.constant 0 : i32
    %c0_i32_1 = arith.constant 0 : i32
    return %c0_i32, %c0_i32_0 : i32, i32
  }
  func.func @transform_2(%arg0: i32) -> (i32, i32) {
    %c0_i32 = arith.constant 0 : i32
    %c0_i32_0 = arith.constant 0 : i32
    %c0_i32_1 = arith.constant 0 : i32
    return %c0_i32, %c0_i32_0 : i32, i32
  }
  func.func @transform_3(%arg0: i32) -> (i32, i32) {
    %c0_i32 = arith.constant 0 : i32
    %c0_i32_0 = arith.constant 0 : i32
    %c0_i32_1 = arith.constant 0 : i32
    return %c0_i32, %c0_i32_0 : i32, i32
  }
  func.func @transform_4(%arg0: i32) -> (i32, i32) {
    %c0_i32 = arith.constant 0 : i32
    %c0_i32_0 = arith.constant 0 : i32
    %c0_i32_1 = arith.constant 0 : i32
    return %c0_i32, %c0_i32_0 : i32, i32
  }
  func.func @transform_5(%arg0: i32) -> (i32, i32) {
    %c0_i32 = arith.constant 0 : i32
    %c0_i32_0 = arith.constant 0 : i32
    %c0_i32_1 = arith.constant 0 : i32
    return %c0_i32, %c0_i32_0 : i32, i32
  }
  func.func @transform_6(%arg0: i32) -> (i32, i32) {
    %c0_i32 = arith.constant 0 : i32
    %c0_i32_0 = arith.constant 0 : i32
    %c0_i32_1 = arith.constant 0 : i32
    return %c0_i32, %c0_i32_0 : i32, i32
  }
  func.func @transform_7(%arg0: i32) -> (i32, i32) {
    %c0_i32 = arith.constant 0 : i32
    %c0_i32_0 = arith.constant 0 : i32
    return %arg0, %c0_i32 : i32, i32
  }
}

</mosaic_0001>

<llo_original>
// kernel: tpu_custom_call.1
$region0: #{tpu_custom_call.1}
  #allocation0 [shape = 'u32[]', space=smem, size = 0x4, offset = 0x4, fixed_abs, tag = 'smem constant byte address 0x4 - core index']
  #allocation1 [shape = 'u32[144,128]{1,0:T(1,128)}', space=vmem, size = 0x12000, scoped, tag = 'internal scratch']
  %s0 = inlined_call_operand.hbm [shape: f32[2,32], index: 0, kind: input, shape index: {}]
  %s1 = inlined_call_operand.hbm [shape: bf16[32,128], index: 1, kind: input, shape index: {}]
  %s2 = inlined_call_operand.vmem [shape: f32[1,128], index: 2, kind: input, shape index: {}]
  %s3 = inlined_call_operand.hbm [shape: bf16[128,128], index: 3, kind: input, shape index: {}]
  %s4 = inlined_call_operand.vmem [shape: f32[1,128], index: 4, kind: input, shape index: {}]
  %s5 = inlined_call_operand.hbm [shape: bf16[128,128], index: 5, kind: input, shape index: {}]
  %s6 = inlined_call_operand.vmem [shape: f32[1,2], index: 6, kind: input, shape index: {}]
  %s7 = inlined_call_operand.hbm [shape: f32[2,2], index: 7, kind: output, shape index: {}]
  %s8 = sld [smem:[#allocation0]]
  $region54: #{tpu_custom_call.1} parent=0
    _
  %s10 = ssub.s32 1, %s8
  %s11 = scalar_select 0, %s10, %s8
  $region1: #{tpu_custom_call.1} parent=0
    #allocation2 [shape = 'u8[8192]{0}', space=vmem, size = 0x2000, scoped, tag = 'input window, operand 0, single buffered']
    #allocation3 [shape = 's32[1]{0}', space=sflag, size = 0x4, scoped, tag = 'scoped memory for tpu_custom_call.1']
    #allocation4 [shape = 's32[1]{0}', space=sflag, size = 0x4, scoped, tag = 'scoped memory for tpu_custom_call.1']
    #allocation5 [shape = 'u8[8192]{0}', space=vmem, size = 0x2000, scoped, tag = 'input window, operand 1, single buffered']
    #allocation6 [shape = 's32[1]{0}', space=sflag, size = 0x4, scoped, tag = 'scoped memory for tpu_custom_call.1']
    #allocation7 [shape = 'u8[32768]{0}', space=vmem, size = 0x8000, scoped, tag = 'input window, operand 3, single buffered']
    #allocation8 [shape = 'u8[32768]{0}', space=vmem, size = 0x8000, scoped, tag = 'input window, operand 5, single buffered']
    #allocation9 [shape = 's32[1]{0}', space=sflag, size = 0x4, scoped, tag = 'scoped memory for tpu_custom_call.1']
    #allocation10 [shape = 'u8[8192]{0}', space=vmem, size = 0x2000, scoped, tag = 'output window, operand 0, single buffered']
    %12 = vsyncpa [#allocation3], 0
    %13 = vsyncpa [#allocation6], 0
    %14 = vsyncpa [#allocation9], 0
    %15 = vsyncpa [#allocation4], 0
    // Predicated region
    $region2: #{tpu_custom_call.1} parent=1 // pred_check
      _
    $region3: #{tpu_custom_call.1} parent=1 // pred_check_branch
      %17 = sbr.rel (0) target = $region5
    $region4: #{tpu_custom_call.1} parent=1 // pred_region
      %s19 = ssub.s32 256, 32
      %20 = vsyncadd [#allocation3], %s19
      %s21 = sshll.u32 [#allocation2], 4
      %s22 = int_to_ptr.vmem [resolvable:$true] %s21
      %27 = dma.hbm_to_vmem [thread:$0]  %s0, 32, %s22, [#allocation3], 32, 32, 2
    $region5: #{tpu_custom_call.1} parent=1 // pred_fallthru
      _
    // Predicated region
    $region6: #{tpu_custom_call.1} parent=1 // pred_check
      _
    $region7: #{tpu_custom_call.1} parent=1 // pred_check_branch
      %29 = sbr.rel (0) target = $region9
    $region8: #{tpu_custom_call.1} parent=1 // pred_region
      %s31 = ssub.s32 256, 256
      %32 = vsyncadd [#allocation6], %s31
      %s33 = sshll.u32 [#allocation5], 4
      %s34 = int_to_ptr.vmem [resolvable:$true] %s33
      %39 = dma.hbm_to_vmem [thread:$0]  %s1, 256, %s34, [#allocation6], 64, 64, 4
    $region9: #{tpu_custom_call.1} parent=1 // pred_fallthru
      _
    // Predicated region
    $region10: #{tpu_custom_call.1} parent=1 // pred_check
      _
    $region11: #{tpu_custom_call.1} parent=1 // pred_check_branch
      %41 = sbr.rel (0) target = $region13
    $region12: #{tpu_custom_call.1} parent=1 // pred_region
      _
    $region13: #{tpu_custom_call.1} parent=1 // pred_fallthru
      _
    // Predicated region
    $region14: #{tpu_custom_call.1} parent=1 // pred_check
      _
    $region15: #{tpu_custom_call.1} parent=1 // pred_check_branch
      %43 = sbr.rel (0) target = $region17
    $region16: #{tpu_custom_call.1} parent=1 // pred_region
      %s45 = ssub.s32 1024, 1024
      %46 = vsyncadd [#allocation6], %s45
      %s47 = sshll.u32 [#allocation7], 4
      %s48 = int_to_ptr.vmem [resolvable:$true] %s47
      %53 = dma.hbm_to_vmem [thread:$0]  %s3, 1024, %s48, [#allocation6], 64, 64, 4
    $region17: #{tpu_custom_call.1} parent=1 // pred_fallthru
      _
    // Predicated region
    $region18: #{tpu_custom_call.1} parent=1 // pred_check
      _
    $region19: #{tpu_custom_call.1} parent=1 // pred_check_branch
      %55 = sbr.rel (0) target = $region21
    $region20: #{tpu_custom_call.1} parent=1 // pred_region
      _
    $region21: #{tpu_custom_call.1} parent=1 // pred_fallthru
      _
    // Predicated region
    $region22: #{tpu_custom_call.1} parent=1 // pred_check
      _
    $region23: #{tpu_custom_call.1} parent=1 // pred_check_branch
      %57 = sbr.rel (0) target = $region25
    $region24: #{tpu_custom_call.1} parent=1 // pred_region
      %s59 = ssub.s32 1024, 1024
      %60 = vsyncadd [#allocation9], %s59
      %s61 = sshll.u32 [#allocation8], 4
      %s62 = int_to_ptr.vmem [resolvable:$true] %s61
      %67 = dma.hbm_to_vmem [thread:$0]  %s5, 1024, %s62, [#allocation9], 64, 64, 4
    $region25: #{tpu_custom_call.1} parent=1 // pred_fallthru
      _
    // Predicated region
    $region26: #{tpu_custom_call.1} parent=1 // pred_check
      _
    $region27: #{tpu_custom_call.1} parent=1 // pred_check_branch
      %69 = sbr.rel (0) target = $region29
    $region28: #{tpu_custom_call.1} parent=1 // pred_region
      _
    $region29: #{tpu_custom_call.1} parent=1 // pred_fallthru
      _
    // Predicated region
    $region30: #{tpu_custom_call.1} parent=1 // pred_check
      _
    $region31: #{tpu_custom_call.1} parent=1 // pred_check_branch
      %71 = sbr.rel (0) target = $region33
    $region32: #{tpu_custom_call.1} parent=1 // pred_region
      %72 = dma.done [#allocation3], 256
    $region33: #{tpu_custom_call.1} parent=1 // pred_fallthru
      _
    // Predicated region
    $region34: #{tpu_custom_call.1} parent=1 // pred_check
      _
    $region35: #{tpu_custom_call.1} parent=1 // pred_check_branch
      %74 = sbr.rel (0) target = $region37
    $region36: #{tpu_custom_call.1} parent=1 // pred_region
      %75 = dma.done [#allocation6], 256
    $region37: #{tpu_custom_call.1} parent=1 // pred_fallthru
      _
    // Predicated region
    $region38: #{tpu_custom_call.1} parent=1 // pred_check
      _
    $region39: #{tpu_custom_call.1} parent=1 // pred_check_branch
      %77 = sbr.rel (0) target = $region41
    $region40: #{tpu_custom_call.1} parent=1 // pred_region
      %78 = dma.done [#allocation6], 1024
    $region41: #{tpu_custom_call.1} parent=1 // pred_fallthru
      _
    // Predicated region
    $region42: #{tpu_custom_call.1} parent=1 // pred_check
      _
    $region43: #{tpu_custom_call.1} parent=1 // pred_check_branch
      %80 = sbr.rel (0) target = $region45
    $region44: #{tpu_custom_call.1} parent=1 // pred_region
      %81 = dma.done [#allocation9], 1024
    $region45: #{tpu_custom_call.1} parent=1 // pred_fallthru
      _
    %v83 = vld [vmem:[#allocation2] sm:$0xff]
    %v84 = vld [vmem:[#allocation2 + $0x8] sm:$0xff]
    %v85 = vpack.c.bf16 %v84, %v83
    %v86 = vld [vmem:[#allocation5] sm:$0xf]
    %v87 = vld [vmem:[#allocation5 + $0x4] sm:$0xf]
    %v88 = vld [vmem:[#allocation5 + $0x8] sm:$0xf]
    %v89 = vld [vmem:[#allocation5 + $0xc] sm:$0xf]
    %v90 = vld [vmem:[%s2] sm:$0x1]
    %v92 = vlaneseq
    %v93 = vshrl.u32 %v92, 7
    %v94 = vsub.s32 0, %v93
    %v95 = vrot.slane %v90, %v94
    %v101 = vunpack.c.l.b16 %v86
    %v102 = vunpack.c.l.b16 %v87
    %v103 = vunpack.c.l.b16 %v88
    %v104 = vunpack.c.l.b16 %v89
    %v105 = vpack.c.b16 %v102, %v101
    %v106 = vpack.c.b16 %v104, %v103
    %vm109 = vcmask 261120
    %v111 = vsel %vm109, %v85, 0
    %113 = vmatprep.subr.bf16.mxu0 0
    %114 = vmatpush1.bf16.msra.mxu0 0
    %115 = vmatprep.subr.bf16.mxu0 0
    %116 = vmatpush1.bf16.msra.mxu0 0
    %117 = vmatprep.subr.bf16.mxu0 0
    %118 = vmatpush1.bf16.msra.mxu0 0
    %119 = vmatprep.subr.bf16.mxu0 0
    %120 = vmatpush1.bf16.msra.mxu0 0
    %121 = vmatprep.subr.bf16.mxu0 0
    %122 = vmatpush1.bf16.msra.mxu0 0
    %123 = vmatprep.subr.bf16.mxu0 0
    %124 = vmatpush1.bf16.msra.mxu0 0
    %125 = vmatprep.subr.bf16.mxu0 0
    %126 = vmatpush1.bf16.msra.mxu0 %v106
    %127 = vmatprep.subr.bf16.mxu0 0
    %128 = vmatpush1.bf16.msra.mxu0 %v105
    %129 = vmatprep.subr.bf16.mxu0 0
    %130 = vmatpush2.bf16.msra.mxu0 0
    %131 = vmatprep.subr.bf16.mxu0 0
    %132 = vmatpush2.bf16.msra.mxu0 0
    %133 = vmatprep.subr.bf16.mxu0 0
    %134 = vmatpush2.bf16.msra.mxu0 0
    %135 = vmatprep.subr.bf16.mxu0 0
    %136 = vmatpush2.bf16.msra.mxu0 0
    %137 = vmatprep.subr.bf16.mxu0 0
    %138 = vmatpush2.bf16.msra.mxu0 0
    %139 = vmatprep.subr.bf16.mxu0 0
    %140 = vmatpush2.bf16.msra.mxu0 0
    %141 = vmatprep.subr.bf16.mxu0 0
    %142 = vmatpush2.bf16.msra.mxu0 0
    %143 = vmatprep.subr.bf16.mxu0 0
    %144 = vmatpush2.bf16.msra.mxu0 0
    %145 = vmatprep.mubr.bf16.mxu0 0
    %146 = vmatmul.mubr.bf16.gmra.mxu0 %v111
    %v147 = vpop.f32.mrf.mxu0
    %v148 = vadd.f32 %v95, %v147
    %v149 = vpop.f32.mrf.mxu0
    %v150 = vpop.f32.mrf.mxu0
    %v151 = vadd.f32 %v95, %v150
    %v152 = vpop.f32.mrf.mxu0
    %153 = vdwg.mxu0
    %v154 = vmax.f32 %v148, 0.0
    %v155 = vmax.f32 %v151, 0.0
    %v156 = vpack.c.bf16 %v155, %v154
    %v157 = vld [vmem:[#allocation7] sm:$0xf]
    %v158 = vld [vmem:[#allocation7 + $0x4] sm:$0xf]
    %v159 = vld [vmem:[#allocation7 + $0x8] sm:$0xf]
    %v160 = vld [vmem:[#allocation7 + $0xc] sm:$0xf]
    %v161 = vld [vmem:[#allocation7 + $0x10] sm:$0xf]
    %v162 = vld [vmem:[#allocation7 + $0x14] sm:$0xf]
    %v163 = vld [vmem:[#allocation7 + $0x18] sm:$0xf]
    %v164 = vld [vmem:[#allocation7 + $0x1c] sm:$0xf]
    %v165 = vld [vmem:[#allocation7 + $0x20] sm:$0xf]
    %v166 = vld [vmem:[#allocation7 + $0x24] sm:$0xf]
    %v167 = vld [vmem:[#allocation7 + $0x28] sm:$0xf]
    %v168 = vld [vmem:[#allocation7 + $0x2c] sm:$0xf]
    %v169 = vld [vmem:[#allocation7 + $0x30] sm:$0xf]
    %v170 = vld [vmem:[#allocation7 + $0x34] sm:$0xf]
    %v171 = vld [vmem:[#allocation7 + $0x38] sm:$0xf]
    %v172 = vld [vmem:[#allocation7 + $0x3c] sm:$0xf]
    %v173 = vld [vmem:[%s4] sm:$0x1]
    %v175 = vlaneseq
    %v176 = vshrl.u32 %v175, 7
    %v177 = vsub.s32 0, %v176
    %v178 = vrot.slane %v173, %v177
    %v196 = vunpack.c.l.b16 %v157
    %v197 = vunpack.c.l.b16 %v158
    %v198 = vunpack.c.l.b16 %v159
    %v199 = vunpack.c.l.b16 %v160
    %v200 = vunpack.c.l.b16 %v161
    %v201 = vunpack.c.l.b16 %v162
    %v202 = vunpack.c.l.b16 %v163
    %v203 = vunpack.c.l.b16 %v164
    %v204 = vunpack.c.l.b16 %v165
    %v205 = vunpack.c.l.b16 %v166
    %v206 = vunpack.c.l.b16 %v167
    %v207 = vunpack.c.l.b16 %v168
    %v208 = vunpack.c.l.b16 %v169
    %v209 = vunpack.c.l.b16 %v170
    %v210 = vunpack.c.l.b16 %v171
    %v211 = vunpack.c.l.b16 %v172
    %v212 = vpack.c.b16 %v197, %v196
    %v213 = vpack.c.b16 %v199, %v198
    %v214 = vpack.c.b16 %v201, %v200
    %v215 = vpack.c.b16 %v203, %v202
    %v216 = vpack.c.b16 %v205, %v204
    %v217 = vpack.c.b16 %v207, %v206
    %v218 = vpack.c.b16 %v209, %v208
    %v219 = vpack.c.b16 %v211, %v210
    %228 = vmatprep.subr.bf16.mxu0 0
    %229 = vmatpush1.bf16.msra.mxu0 %v219
    %230 = vmatprep.subr.bf16.mxu0 0
    %231 = vmatpush1.bf16.msra.mxu0 %v218
    %232 = vmatprep.subr.bf16.mxu0 0
    %233 = vmatpush1.bf16.msra.mxu0 %v217
    %234 = vmatprep.subr.bf16.mxu0 0
    %235 = vmatpush1.bf16.msra.mxu0 %v216
    %236 = vmatprep.subr.bf16.mxu0 0
    %237 = vmatpush1.bf16.msra.mxu0 %v215
    %238 = vmatprep.subr.bf16.mxu0 0
    %239 = vmatpush1.bf16.msra.mxu0 %v214
    %240 = vmatprep.subr.bf16.mxu0 0
    %241 = vmatpush1.bf16.msra.mxu0 %v213
    %242 = vmatprep.subr.bf16.mxu0 0
    %243 = vmatpush1.bf16.msra.mxu0 %v212
    %244 = vmatprep.subr.bf16.mxu0 0
    %245 = vmatpush2.bf16.msra.mxu0 0
    %246 = vmatprep.subr.bf16.mxu0 0
    %247 = vmatpush2.bf16.msra.mxu0 0
    %248 = vmatprep.subr.bf16.mxu0 0
    %249 = vmatpush2.bf16.msra.mxu0 0
    %250 = vmatprep.subr.bf16.mxu0 0
    %251 = vmatpush2.bf16.msra.mxu0 0
    %252 = vmatprep.subr.bf16.mxu0 0
    %253 = vmatpush2.bf16.msra.mxu0 0
    %254 = vmatprep.subr.bf16.mxu0 0
    %255 = vmatpush2.bf16.msra.mxu0 0
    %256 = vmatprep.subr.bf16.mxu0 0
    %257 = vmatpush2.bf16.msra.mxu0 0
    %258 = vmatprep.subr.bf16.mxu0 0
    %259 = vmatpush2.bf16.msra.mxu0 0
    %260 = vmatprep.mubr.bf16.mxu0 0
    %261 = vmatmul.mubr.bf16.gmra.mxu0 %v156
    %v262 = vpop.f32.mrf.mxu0
    %v263 = vadd.f32 %v178, %v262
    %v264 = vpop.f32.mrf.mxu0
    %v265 = vpop.f32.mrf.mxu0
    %v266 = vadd.f32 %v178, %v265
    %v267 = vpop.f32.mrf.mxu0
    %268 = vdwg.mxu0
    %v269 = vmax.f32 %v263, 0.0
    %v270 = vmax.f32 %v266, 0.0
    %v271 = vpack.c.bf16 %v270, %v269
    %v272 = vld [vmem:[#allocation8] sm:$0xf]
    %v273 = vld [vmem:[#allocation8 + $0x4] sm:$0xf]
    %v274 = vld [vmem:[#allocation8 + $0x8] sm:$0xf]
    %v275 = vld [vmem:[#allocation8 + $0xc] sm:$0xf]
    %v276 = vld [vmem:[#allocation8 + $0x10] sm:$0xf]
    %v277 = vld [vmem:[#allocation8 + $0x14] sm:$0xf]
    %v278 = vld [vmem:[#allocation8 + $0x18] sm:$0xf]
    %v279 = vld [vmem:[#allocation8 + $0x1c] sm:$0xf]
    %v280 = vld [vmem:[#allocation8 + $0x20] sm:$0xf]
    %v281 = vld [vmem:[#allocation8 + $0x24] sm:$0xf]
    %v282 = vld [vmem:[#allocation8 + $0x28] sm:$0xf]
    %v283 = vld [vmem:[#allocation8 + $0x2c] sm:$0xf]
    %v284 = vld [vmem:[#allocation8 + $0x30] sm:$0xf]
    %v285 = vld [vmem:[#allocation8 + $0x34] sm:$0xf]
    %v286 = vld [vmem:[#allocation8 + $0x38] sm:$0xf]
    %v287 = vld [vmem:[#allocation8 + $0x3c] sm:$0xf]
    %v304 = vunpack.c.l.b16 %v272
    %v305 = vunpack.c.l.b16 %v273
    %v306 = vunpack.c.l.b16 %v274
    %v307 = vunpack.c.l.b16 %v275
    %v308 = vunpack.c.l.b16 %v276
    %v309 = vunpack.c.l.b16 %v277
    %v310 = vunpack.c.l.b16 %v278
    %v311 = vunpack.c.l.b16 %v279
    %v312 = vunpack.c.l.b16 %v280
    %v313 = vunpack.c.l.b16 %v281
    %v314 = vunpack.c.l.b16 %v282
    %v315 = vunpack.c.l.b16 %v283
    %v316 = vunpack.c.l.b16 %v284
    %v317 = vunpack.c.l.b16 %v285
    %v318 = vunpack.c.l.b16 %v286
    %v319 = vunpack.c.l.b16 %v287
    %v320 = vpack.c.b16 %v305, %v304
    %v321 = vpack.c.b16 %v307, %v306
    %v322 = vpack.c.b16 %v309, %v308
    %v323 = vpack.c.b16 %v311, %v310
    %v324 = vpack.c.b16 %v313, %v312
    %v325 = vpack.c.b16 %v315, %v314
    %v326 = vpack.c.b16 %v317, %v316
    %v327 = vpack.c.b16 %v319, %v318
    %336 = vmatprep.subr.bf16.mxu0 0
    %337 = vmatpush1.bf16.msra.mxu0 %v327
    %338 = vmatprep.subr.bf16.mxu0 0
    %339 = vmatpush1.bf16.msra.mxu0 %v326
    %340 = vmatprep.subr.bf16.mxu0 0
    %341 = vmatpush1.bf16.msra.mxu0 %v325
    %342 = vmatprep.subr.bf16.mxu0 0
    %343 = vmatpush1.bf16.msra.mxu0 %v324
    %344 = vmatprep.subr.bf16.mxu0 0
    %345 = vmatpush1.bf16.msra.mxu0 %v323
    %346 = vmatprep.subr.bf16.mxu0 0
    %347 = vmatpush1.bf16.msra.mxu0 %v322
    %348 = vmatprep.subr.bf16.mxu0 0
    %349 = vmatpush1.bf16.msra.mxu0 %v321
    %350 = vmatprep.subr.bf16.mxu0 0
    %351 = vmatpush1.bf16.msra.mxu0 %v320
    %352 = vmatprep.subr.bf16.mxu0 0
    %353 = vmatpush2.bf16.msra.mxu0 0
    %354 = vmatprep.subr.bf16.mxu0 0
    %355 = vmatpush2.bf16.msra.mxu0 0
    %356 = vmatprep.subr.bf16.mxu0 0
    %357 = vmatpush2.bf16.msra.mxu0 0
    %358 = vmatprep.subr.bf16.mxu0 0
    %359 = vmatpush2.bf16.msra.mxu0 0
    %360 = vmatprep.subr.bf16.mxu0 0
    %361 = vmatpush2.bf16.msra.mxu0 0
    %362 = vmatprep.subr.bf16.mxu0 0
    %363 = vmatpush2.bf16.msra.mxu0 0
    %364 = vmatprep.subr.bf16.mxu0 0
    %365 = vmatpush2.bf16.msra.mxu0 0
    %366 = vmatprep.subr.bf16.mxu0 0
    %367 = vmatpush2.bf16.msra.mxu0 0
    %368 = vmatprep.mubr.bf16.mxu0 0
    %369 = vmatmul.mubr.bf16.gmra.mxu0 %v271
    %v370 = vpop.f32.mrf.mxu0
    %v371 = vadd.f32 0.0, %v370
    %v372 = vpop.f32.mrf.mxu0
    %v373 = vpop.f32.mrf.mxu0
    %v374 = vadd.f32 0.0, %v373
    %v375 = vpop.f32.mrf.mxu0
    %376 = vdwg.mxu0
    %v377 = vld [vmem:[%s6] sm:$0x1]
    %v379 = vlaneseq
    %v380 = vshrl.u32 %v379, 7
    %v381 = vsub.s32 0, %v380
    %v382 = vrot.slane %v377, %v381
    %v384 = vadd.f32 %v371, %v382
    %v385 = vadd.f32 %v374, %v382
    %vm386 = vcmask 15360
    %387 = vst.msk [vmem:[#allocation10] sm:$0xff] %vm386, %v384
    %388 = vst.msk [vmem:[#allocation10 + $0x8] sm:$0xff] %vm386, %v385
    // Predicated region
    $region46: #{tpu_custom_call.1} parent=1 // pred_check
      _
    $region47: #{tpu_custom_call.1} parent=1 // pred_check_branch
      %390 = sbr.rel (0) target = $region49
    $region48: #{tpu_custom_call.1} parent=1 // pred_region
      %s392 = ssub.s32 256, 32
      %393 = vsyncadd [#allocation4], %s392
      %s394 = sshll.u32 [#allocation10], 4
      %s395 = int_to_ptr.vmem [resolvable:$true] %s394
      %400 = dma.vmem_to_hbm [thread:$0]  %s395, 32, %s7, [#allocation4], 32, 32, 2
    $region49: #{tpu_custom_call.1} parent=1 // pred_fallthru
      _
    // Predicated region
    $region50: #{tpu_custom_call.1} parent=1 // pred_check
      _
    $region51: #{tpu_custom_call.1} parent=1 // pred_check_branch
      %402 = sbr.rel (0) target = $region53
    $region52: #{tpu_custom_call.1} parent=1 // pred_region
      %403 = dma.done [#allocation4], 256
    $region53: #{tpu_custom_call.1} parent=1 // pred_fallthru
      _
    %404 = vsyncpa [#allocation3], 1
    %405 = vsyncpa [#allocation6], 1
    %406 = vsyncpa [#allocation9], 1
    %407 = vsyncpa [#allocation4], 1

</llo_original>
